<compile_context>
chip_gen: v5e
topology: v5e:2x2
jax: 0.10.0
libtpu: 0.0.40
codegen_flags: <defaults>
</compile_context>

<pallas_src>
import functools
import math

import jax
import jax.numpy as jnp
from jax import lax
from jax.experimental import pallas as pl
from jax.experimental.pallas import tpu as pltpu

_LANES = 128
_NEG_CLAMP = -100.0  # PyTorch's binary_cross_entropy clamps log terms at -100.


def _round_up(x, m):
    return ((x + m - 1) // m) * m


def _sublane_multiple(dtype):
    itemsize = jnp.dtype(dtype).itemsize
    return {4: 8, 2: 16, 1: 32}.get(itemsize, 8)


def _focal_terms(x, t, *, alpha, gamma, logits):
    """Per-element focal loss, computed in f32."""
    if logits:
        # Stable BCE-with-logits: max(x, 0) - x*t + log(1 + exp(-|x|))
        bce = jnp.maximum(x, 0.0) - x * t + jnp.log(1.0 + jnp.exp(-jnp.abs(x)))
    else:
        log_p = jnp.maximum(jnp.log(x), _NEG_CLAMP)
        log_1mp = jnp.maximum(jnp.log(1.0 - x), _NEG_CLAMP)
        bce = -(t * log_p + (1.0 - t) * log_1mp)
    pt = jnp.exp(-bce)
    one_minus_pt = 1.0 - pt
    g = float(gamma)
    if g == int(g) and g >= 0:
        w = lax.integer_pow(one_minus_pt, int(g))   # default gamma=2 -> one VPU multiply
    else:
        w = jnp.power(one_minus_pt, g)
    return alpha * w * bce


def _partial_sum_kernel(x_ref, t_ref, o_ref, *, alpha, gamma, logits):
    x = x_ref[...].astype(jnp.float32)
    t = t_ref[...].astype(jnp.float32)
    fl = _focal_terms(x, t, alpha=alpha, gamma=gamma, logits=logits)
    # Sublane-reduce to a lane-dense (1, 128) partial sum per block; the final
    # (tiny) cross-lane / cross-block reduction happens once in the wrapper.
    o_ref[...] = jnp.sum(fl, axis=0, keepdims=True)[None]


def _elementwise_kernel(x_ref, t_ref, o_ref, *, alpha, gamma, logits):
    x = x_ref[...].astype(jnp.float32)
    t = t_ref[...].astype(jnp.float32)
    fl = _focal_terms(x, t, alpha=alpha, gamma=gamma, logits=logits)
    o_ref[...] = fl.astype(o_ref.dtype)


def focal_loss(inputs, targets, *, alpha=1.0, gamma=2.0, logits=False,
               reduce=True, block_rows=512):
    """Pallas TPU implementation of FocalLoss.forward."""
    orig_shape = inputs.shape
    n = math.prod(orig_shape) if orig_shape else 1

    sub = max(_sublane_multiple(inputs.dtype), _sublane_multiple(targets.dtype))
    m_rows = pl.cdiv(n, _LANES)
    tm = min(max(block_rows, sub), _round_up(m_rows, sub))
    tm = _round_up(tm, sub)
    m_pad = _round_up(m_rows, tm)
    num_blocks = m_pad // tm
    pad = m_pad * _LANES - n

    # Neutral padding pair -> focal loss exactly 0 for padded elements.
    pad_x = 100.0 if logits else 1.0
    pad_t = 1.0

    flat_x = jnp.ravel(inputs)
    flat_t = jnp.ravel(targets)
    if pad:
        flat_x = jnp.concatenate([flat_x, jnp.full((pad,), pad_x, flat_x.dtype)])
        flat_t = jnp.concatenate([flat_t, jnp.full((pad,), pad_t, flat_t.dtype)])
    x2 = flat_x.reshape(m_pad, _LANES)
    t2 = flat_t.reshape(m_pad, _LANES)

    in_specs = [
        pl.BlockSpec((tm, _LANES), lambda i: (i, 0)),
        pl.BlockSpec((tm, _LANES), lambda i: (i, 0)),
    ]
    compiler_params = pltpu.CompilerParams(
        dimension_semantics=("parallel",),
        vmem_limit_bytes=32 * 1024 * 1024,
    )

    if reduce:
        kernel = functools.partial(_partial_sum_kernel, alpha=float(alpha),
                                   gamma=float(gamma), logits=bool(logits))
        partials = pl.pallas_call(
            kernel,
            out_shape=jax.ShapeDtypeStruct((num_blocks, 1, _LANES), jnp.float32),
            grid_spec=pltpu.PrefetchScalarGridSpec(
                num_scalar_prefetch=0,
                grid=(num_blocks,),
                in_specs=in_specs,
                out_specs=pl.BlockSpec((1, 1, _LANES), lambda i: (i, 0, 0)),
            ),
            compiler_params=compiler_params,
        )(x2, t2)
        # Tiny epilogue: sum num_blocks*128 lane partials; divide by the ORIGINAL
        # element count (padding contributed exactly zero).
        return jnp.sum(partials) / jnp.float32(n)

    kernel = functools.partial(_elementwise_kernel, alpha=float(alpha),
                               gamma=float(gamma), logits=bool(logits))
    out = pl.pallas_call(
        kernel,
        out_shape=jax.ShapeDtypeStruct((m_pad, _LANES), jnp.float32),
        grid_spec=pltpu.PrefetchScalarGridSpec(
            num_scalar_prefetch=0,
            grid=(num_blocks,),
            in_specs=in_specs,
            out_specs=pl.BlockSpec((tm, _LANES), lambda i: (i, 0)),
        ),
        compiler_params=compiler_params,
    )(x2, t2)
    return out.reshape(-1)[:n].reshape(orig_shape)


if __name__ == "__main__":
    key = jax.random.PRNGKey(0)
    k_p, k_t = jax.random.split(key)

    # Small shapes consistent with the module: per-example binary predictions.
    batch, n_cls = 8, 130
    raw = jax.random.normal(k_p, (batch, n_cls), dtype=jnp.float32)
    probs = jax.nn.sigmoid(raw)                                   # inputs in (0, 1)
    targets = (jax.random.uniform(k_t, (batch, n_cls)) > 0.5).astype(jnp.float32)

    # Default forward: alpha=1, gamma=2, logits=False, reduce=True.
    loss = focal_loss(probs, targets)
    jax.block_until_ready(loss)

    # Pure-JAX reference.
    bce = -(targets * jnp.log(probs) + (1.0 - targets) * jnp.log(1.0 - probs))
    pt = jnp.exp(-bce)
    f_loss_ref = (1.0 - pt) ** 2 * bce
    ref = jnp.mean(f_loss_ref)
    assert jnp.allclose(loss, ref, rtol=1e-5, atol=1e-5), (loss, ref)

    # Multi-block grid path (same answer with a tiny row tile).
    loss_mb = focal_loss(probs, targets, block_rows=8)
    assert jnp.allclose(loss_mb, ref, rtol=1e-5, atol=1e-5), (loss_mb, ref)

    # reduce=False path (per-element focal loss, original shape).
    per_elem = focal_loss(probs, targets, reduce=False)
    assert per_elem.shape == probs.shape
    assert jnp.allclose(per_elem, f_loss_ref, rtol=1e-5, atol=1e-5)

    # logits=True path.
    loss_logits = focal_loss(raw, targets, logits=True)
    bce_l = jnp.maximum(raw, 0.0) - raw * targets + jnp.log(1.0 + jnp.exp(-jnp.abs(raw)))
    pt_l = jnp.exp(-bce_l)
    ref_l = jnp.mean((1.0 - pt_l) ** 2 * bce_l)
    assert jnp.allclose(loss_logits, ref_l, rtol=1e-5, atol=1e-5), (loss_logits, ref_l)

    print("KERNEL_OK")
</pallas_src>

<mosaic_0001>
module attributes {stable_mosaic.version = 11 : i64} {
  func.func @_partial_sum_kernel(%arg0: i32, %arg1: memref<16x128xf32, #tpu.memory_space<vmem>>, %arg2: memref<16x128xf32, #tpu.memory_space<vmem>>, %arg3: memref<1x1x128xf32, #tpu.memory_space<vmem>>) attributes {dimension_semantics = [#tpu.dimension_semantics<parallel>], iteration_bounds = array<i64: 1>, scalar_prefetch = 0 : i64, scratch_operands = 0 : i64, tpu.core_type = #tpu.core_type<tc>, window_params = [{transform_indices = @transform_0, window_bounds = array<i64: 16, 128>}, {transform_indices = @transform_1, window_bounds = array<i64: 16, 128>}, {transform_indices = @transform_2, window_bounds = array<i64: 1, 1, 128>}]} {
    %c0 = arith.constant 0 : index
    %c0_0 = arith.constant 0 : index
    %0 = vector.load %arg1[%c0, %c0_0] : memref<16x128xf32, #tpu.memory_space<vmem>>, vector<16x128xf32>
    %c0_1 = arith.constant 0 : index
    %c0_2 = arith.constant 0 : index
    %1 = vector.load %arg2[%c0_1, %c0_2] : memref<16x128xf32, #tpu.memory_space<vmem>>, vector<16x128xf32>
    %2 = math.log %0 : vector<16x128xf32>
    %cst = arith.constant -1.000000e+02 : f32
    %3 = vector.broadcast %cst : f32 to vector<16x128xf32>
    %4 = arith.maximumf %2, %3 : vector<16x128xf32>
    %cst_3 = arith.constant 1.000000e+00 : f32
    %5 = vector.broadcast %cst_3 : f32 to vector<16x128xf32>
    %6 = arith.subf %5, %0 : vector<16x128xf32>
    %7 = math.log %6 : vector<16x128xf32>
    %cst_4 = arith.constant -1.000000e+02 : f32
    %8 = vector.broadcast %cst_4 : f32 to vector<16x128xf32>
    %9 = arith.maximumf %7, %8 : vector<16x128xf32>
    %10 = arith.mulf %1, %4 : vector<16x128xf32>
    %cst_5 = arith.constant 1.000000e+00 : f32
    %11 = vector.broadcast %cst_5 : f32 to vector<16x128xf32>
    %12 = arith.subf %11, %1 : vector<16x128xf32>
    %13 = arith.mulf %12, %9 : vector<16x128xf32>
    %14 = arith.addf %10, %13 : vector<16x128xf32>
    %cst_6 = arith.constant 0.000000e+00 : f32
    %15 = vector.broadcast %cst_6 : f32 to vector<16x128xf32>
    %16 = arith.subf %15, %14 : vector<16x128xf32>
    %cst_7 = arith.constant 0.000000e+00 : f32
    %17 = vector.broadcast %cst_7 : f32 to vector<16x128xf32>
    %18 = arith.subf %17, %16 : vector<16x128xf32>
    %19 = math.exp %18 : vector<16x128xf32>
    %cst_8 = arith.constant 1.000000e+00 : f32
    %20 = vector.broadcast %cst_8 : f32 to vector<16x128xf32>
    %21 = arith.subf %20, %19 : vector<16x128xf32>
    %22 = arith.mulf %21, %21 : vector<16x128xf32>
    %cst_9 = arith.constant 1.000000e+00 : f32
    %23 = vector.broadcast %cst_9 : f32 to vector<16x128xf32>
    %24 = arith.mulf %23, %22 : vector<16x128xf32>
    %25 = arith.mulf %24, %16 : vector<16x128xf32>
    %cst_10 = arith.constant dense<0.000000e+00> : vector<128xf32>
    %26 = vector.multi_reduction <add>, %25, %cst_10 [0] : vector<16x128xf32> to vector<128xf32>
    %27 = vector.shape_cast %26 : vector<128xf32> to vector<1x128xf32>
    %28 = vector.shape_cast %27 : vector<1x128xf32> to vector<1x1x128xf32>
    %c0_11 = arith.constant 0 : index
    %c0_12 = arith.constant 0 : index
    %c0_13 = arith.constant 0 : index
    %29 = vector.load %arg3[%c0_11, %c0_12, %c0_13] : memref<1x1x128xf32, #tpu.memory_space<vmem>>, vector<1x1x128xf32>
    tpu.vector_store %arg3[%c0_11, %c0_12, %c0_13], %28 {strides = array<i32>} : memref<1x1x128xf32, #tpu.memory_space<vmem>>, vector<1x1x128xf32>,
    return
  }
  func.func @transform_0(%arg0: i32) -> (i32, i32) {
    %c0_i32 = arith.constant 0 : i32
    %c0_i32_0 = arith.constant 0 : i32
    return %arg0, %c0_i32 : i32, i32
  }
  func.func @transform_1(%arg0: i32) -> (i32, i32) {
    %c0_i32 = arith.constant 0 : i32
    %c0_i32_0 = arith.constant 0 : i32
    return %arg0, %c0_i32 : i32, i32
  }
  func.func @transform_2(%arg0: i32) -> (i32, i32, i32) {
    %c0_i32 = arith.constant 0 : i32
    %c0_i32_0 = arith.constant 0 : i32
    %c0_i32_1 = arith.constant 0 : i32
    return %arg0, %c0_i32, %c0_i32_0 : i32, i32, i32
  }
}

</mosaic_0001>

<llo_original>
// kernel: tpu_custom_call.1
$region0: #{tpu_custom_call.1}
  #allocation0 [shape = 'u32[]', space=smem, size = 0x4, offset = 0x4, fixed_abs, tag = 'smem constant byte address 0x4 - core index']
  #allocation1 [shape = 'u32[72,128]{1,0:T(1,128)}', space=vmem, size = 0x9000, scoped, tag = 'internal scratch']
  %s0 = inlined_call_operand.hbm [shape: f32[16,128], index: 0, kind: input, shape index: {}]
  %s1 = inlined_call_operand.hbm [shape: f32[16,128], index: 1, kind: input, shape index: {}]
  %s2 = inlined_call_operand.hbm [shape: f32[1,1,128], index: 2, kind: output, shape index: {}]
  %s3 = sld [smem:[#allocation0]]
  $region26: #{tpu_custom_call.1} parent=0
    _
  %s5 = ssub.s32 1, %s3
  %s6 = scalar_select 0, %s5, %s3
  $region1: #{tpu_custom_call.1} parent=0
    #allocation2 [shape = 'u8[8192]{0}', space=vmem, size = 0x2000, scoped, tag = 'input window, operand 0, single buffered']
    #allocation3 [shape = 's32[1]{0}', space=sflag, size = 0x4, scoped, tag = 'scoped memory for tpu_custom_call.1']
    #allocation4 [shape = 's32[1]{0}', space=sflag, size = 0x4, scoped, tag = 'scoped memory for tpu_custom_call.1']
    #allocation5 [shape = 'u8[8192]{0}', space=vmem, size = 0x2000, scoped, tag = 'input window, operand 1, single buffered']
    #allocation6 [shape = 's32[1]{0}', space=sflag, size = 0x4, scoped, tag = 'scoped memory for tpu_custom_call.1']
    #allocation7 [shape = 'u8[512]{0}', space=vmem, size = 0x400, scoped, tag = 'output window, operand 0, single buffered']
    %7 = vsyncpa [#allocation3], 0
    %8 = vsyncpa [#allocation6], 0
    %9 = vsyncpa [#allocation4], 0
    // Predicated region
    $region2: #{tpu_custom_call.1} parent=1 // pred_check
      _
    $region3: #{tpu_custom_call.1} parent=1 // pred_check_branch
      %11 = sbr.rel (0) target = $region5
    $region4: #{tpu_custom_call.1} parent=1 // pred_region
      %13 = vsyncadd [#allocation3], 0
      %s14 = sshll.u32 %s0, 4
      %s15 = int_to_ptr.hbm [resolvable:$true] %s14
      %s16 = sshll.u32 [#allocation2], 4
      %s17 = int_to_ptr.vmem [resolvable:$true] %s16
      %22 = dma.hbm_to_vmem [thread:$0]  %s15, 256, %s17, [#allocation3], 128, 128, 8
    $region5: #{tpu_custom_call.1} parent=1 // pred_fallthru
      _
    // Predicated region
    $region6: #{tpu_custom_call.1} parent=1 // pred_check
      _
    $region7: #{tpu_custom_call.1} parent=1 // pred_check_branch
      %24 = sbr.rel (0) target = $region9
    $region8: #{tpu_custom_call.1} parent=1 // pred_region
      %26 = vsyncadd [#allocation6], 0
      %s27 = sshll.u32 %s1, 4
      %s28 = int_to_ptr.hbm [resolvable:$true] %s27
      %s29 = sshll.u32 [#allocation5], 4
      %s30 = int_to_ptr.vmem [resolvable:$true] %s29
      %35 = dma.hbm_to_vmem [thread:$0]  %s28, 256, %s30, [#allocation6], 128, 128, 8
    $region9: #{tpu_custom_call.1} parent=1 // pred_fallthru
      _
    // Predicated region
    $region10: #{tpu_custom_call.1} parent=1 // pred_check
      _
    $region11: #{tpu_custom_call.1} parent=1 // pred_check_branch
      %37 = sbr.rel (0) target = $region13
    $region12: #{tpu_custom_call.1} parent=1 // pred_region
      %39 = dma.done [#allocation3], 256
    $region13: #{tpu_custom_call.1} parent=1 // pred_fallthru
      _
    // Predicated region
    $region14: #{tpu_custom_call.1} parent=1 // pred_check
      _
    $region15: #{tpu_custom_call.1} parent=1 // pred_check_branch
      %41 = sbr.rel (0) target = $region17
    $region16: #{tpu_custom_call.1} parent=1 // pred_region
      %43 = dma.done [#allocation6], 256
    $region17: #{tpu_custom_call.1} parent=1 // pred_fallthru
      _
    %v44 = vld [vmem:[#allocation2] sm:$0xff]
    %v45 = vld [vmem:[#allocation2 + $0x8] sm:$0xff]
    %v46 = vld [vmem:[#allocation5] sm:$0xff]
    %v47 = vld [vmem:[#allocation5 + $0x8] sm:$0xff]
    %v48 = vlog2.pop %v44
    %v49 = vmul.f32 %v48, 0.6931472
    %v50 = vlog2.pop %v45
    %v51 = vmul.f32 %v50, 0.6931472
    %v52 = vmax.f32 %v49, -100.0
    %v53 = vmax.f32 %v51, -100.0
    %v54 = vsub.f32 1.0, %v44
    %v55 = vsub.f32 1.0, %v45
    %v56 = vlog2.pop %v54
    %v57 = vmul.f32 %v56, 0.6931472
    %v58 = vlog2.pop %v55
    %v59 = vmul.f32 %v58, 0.6931472
    %v60 = vmax.f32 %v57, -100.0
    %v61 = vmax.f32 %v59, -100.0
    %v62 = vmul.f32 %v46, %v52
    %v63 = vmul.f32 %v47, %v53
    %v64 = vsub.f32 1.0, %v46
    %v65 = vsub.f32 1.0, %v47
    %v66 = vmul.f32 %v64, %v60
    %v67 = vmul.f32 %v65, %v61
    %v68 = vadd.f32 %v62, %v66
    %v69 = vadd.f32 %v63, %v67
    %v70 = vsub.f32 0.0, %v68
    %v71 = vsub.f32 0.0, %v69
    %v72 = vsub.f32 0.0, %v70
    %v73 = vsub.f32 0.0, %v71
    %v74 = vmul.f32 %v72, 1.442695
    %v75 = vpow.pop %v74
    %v76 = vmul.f32 %v73, 1.442695
    %v77 = vpow.pop %v76
    %v78 = vsub.f32 1.0, %v75
    %v79 = vsub.f32 1.0, %v77
    %v80 = vmul.f32 %v78, %v78
    %v81 = vmul.f32 %v79, %v79
    %v82 = vmul.f32 %v80, %v70
    %v83 = vmul.f32 %v81, %v71
    %v84 = vadd.f32 %v82, %v83
    %v85 = vrot.slane %v84, 4
    %v86 = vadd.f32 %v84, %v85
    %v87 = vrot.slane %v86, 2
    %v88 = vadd.f32 %v86, %v87
    %v89 = vrot.slane %v88, 1
    %v90 = vadd.f32 %v88, %v89
    %91 = vst [vmem:[#allocation7] sm:$0x1] %v90
    // Predicated region
    $region18: #{tpu_custom_call.1} parent=1 // pred_check
      _
    $region19: #{tpu_custom_call.1} parent=1 // pred_check_branch
      %93 = sbr.rel (0) target = $region21
    $region20: #{tpu_custom_call.1} parent=1 // pred_region
      %95 = vsyncadd [#allocation4], 0
      %s97 = sshll.u32 [#allocation7], 4
      %s98 = int_to_ptr.vmem [resolvable:$true] %s97
      %s99 = sshll.u32 %s2, 4
      %s100 = int_to_ptr.hbm [resolvable:$true] %s99
      %102 = dma.vmem_to_hbm [thread:$0]  %s98, 16, %s100, [#allocation4]
    $region21: #{tpu_custom_call.1} parent=1 // pred_fallthru
      _
    // Predicated region
    $region22: #{tpu_custom_call.1} parent=1 // pred_check
      _
    $region23: #{tpu_custom_call.1} parent=1 // pred_check_branch
      %104 = sbr.rel (0) target = $region25
    $region24: #{tpu_custom_call.1} parent=1 // pred_region
      %106 = dma.done [#allocation4], 16
    $region25: #{tpu_custom_call.1} parent=1 // pred_fallthru
      _
    %107 = vsyncpa [#allocation3], 1
    %108 = vsyncpa [#allocation6], 1
    %109 = vsyncpa [#allocation4], 1

</llo_original>
